<compile_context>
chip_gen: v6e
topology: v6e:2x2x1
jax: 0.10.0
libtpu: 0.0.40
codegen_flags: <defaults>
</compile_context>

<pallas_src>
import functools

import jax
import jax.numpy as jnp
from jax.experimental import pallas as pl
from jax.experimental.pallas import tpu as pltpu


def _round_up(x: int, m: int) -> int:
    return ((x + m - 1) // m) * m


def _physical_vmem_bytes() -> int:
    try:
        return int(pltpu.get_tpu_info().vmem_capacity_bytes)
    except Exception:
        return 64 << 20  # conservative: v7x per-TensorCore VMEM


_VMEM_CAP = int(0.85 * _physical_vmem_bytes())


def _choose_tm(M: int, tm_target: int):
    """Token-tile height: multiple of 8, clamped to M, >=2 grid steps if possible."""
    tm_eff = _round_up(min(tm_target, _round_up(M, 8)), 8)
    # v7x megacore: the M axis is marked "parallel" and sharded across the two
    # TensorCores.  A single grid step idles one core -> make sure we have >=2.
    if _round_up(M, tm_eff) // tm_eff < 2 and tm_eff > 8:
        tm_eff = max(8, _round_up(tm_eff // 2, 8))
    M_pad = _round_up(M, tm_eff)
    return tm_eff, M_pad


def _pick_hdim_chunk(hdim: int, cap: int):
    """Return (tk, hdim_pad).  tk <= cap (multiple of 128) whenever hdim > cap."""
    cap = max(128, (cap // 128) * 128)
    if hdim <= cap:
        return hdim, hdim
    for tk in range(cap, 0, -128):
        if hdim % tk == 0:
            return tk, hdim
    # No friendly divisor: zero-pad hdim so the cap is honored.  Exact: padded
    # W_fc^T columns are 0 -> h columns are 0 -> silu(0)=0 -> padded W_proj^T
    # rows contribute nothing.
    return cap, _round_up(hdim, cap)


# ----------------------------------------------------------------------------
# Kernels
# ----------------------------------------------------------------------------

def _mlp_resident_kernel(x_ref, wfc_t_ref, wproj_t_ref, o_ref):
    # x_ref:       (tm, dim)    token tile
    # wfc_t_ref:   (dim, hdim)  full W_fc^T   (resident in VMEM, fetched once)
    # wproj_t_ref: (hdim, dim)  full W_proj^T (resident in VMEM, fetched once)
    # o_ref:       (tm, dim)    output tile
    h = jnp.dot(x_ref[...], wfc_t_ref[...], preferred_element_type=jnp.float32)
    h = h * jax.nn.sigmoid(h)  # SiLU in f32 (EUP slot; exact also on v5e)
    o_ref[...] = jnp.dot(h.astype(wproj_t_ref.dtype), wproj_t_ref[...],
                         preferred_element_type=jnp.float32).astype(o_ref.dtype)


def _mlp_chunked_kernel(x_ref, wfc_t_ref, wproj_t_ref, o_ref, acc_ref):
    # Fallback when the weight pair does not fit in VMEM.
    # x_ref:       (tm, dim)   token tile (block index constant along k)
    # wfc_t_ref:   (dim, tk)   hdim-chunk of W_fc^T
    # wproj_t_ref: (tk, dim)   hdim-chunk of W_proj^T
    # acc_ref:     (tm, dim)   f32 accumulator resident across the k axis
    k = pl.program_id(1)
    last = pl.num_programs(1) - 1

    h = jnp.dot(x_ref[...], wfc_t_ref[...], preferred_element_type=jnp.float32)
    h = h * jax.nn.sigmoid(h)  # SiLU is elementwise over hdim -> exact per chunk
    part = jnp.dot(h.astype(wproj_t_ref.dtype), wproj_t_ref[...],
                   preferred_element_type=jnp.float32)

    @pl.when(k == 0)
    def _init():
        acc_ref[...] = jnp.zeros_like(acc_ref)

    total = acc_ref[...] + part

    @pl.when(k < last)
    def _carry():
        acc_ref[...] = total

    @pl.when(k == last)
    def _finalize():  # fused: no extra f32 store + reload on the last chunk
        o_ref[...] = total.astype(o_ref.dtype)


# ----------------------------------------------------------------------------
# Wrapper
# ----------------------------------------------------------------------------

@functools.partial(jax.jit, static_argnames=("tm", "hdim_chunk", "force_chunked"))
def mlp_forward(x, w_fc_t, w_proj_t, *, tm=None, hdim_chunk=1024,
                force_chunked=False):
    """x: (..., dim).  w_fc_t: (dim, hdim) = W_fc^T.  w_proj_t: (hdim, dim) = W_proj^T.

    Weights must be supplied in the pre-transposed canonical layout (do the
    transpose once at parameter-creation time, not per forward call).
    """
    orig_shape = x.shape
    dim = orig_shape[-1]
    hdim = w_fc_t.shape[1]
    assert w_fc_t.shape == (dim, hdim)
    assert w_proj_t.shape == (hdim, dim)

    compute_dtype = x.dtype  # matches F.linear(x, weight.type_as(x))
    x2d = x.reshape(-1, dim)
    M = x2d.shape[0]

    w_bytes = jnp.dtype(compute_dtype).itemsize
    io_bytes = jnp.dtype(x.dtype).itemsize
    w_pair_bytes = 2 * dim * hdim * w_bytes  # W_fc^T + W_proj^T

    # ---- decide: resident weights (preferred) vs. streamed hdim chunks ------
    tm_probe = tm if tm is not None else 256
    resident_est = (2 * w_pair_bytes                       # weights (2-buffer worst case)
                    + 2 * tm_probe * dim * (w_bytes + io_bytes)  # x / out tiles
                    + 2 * tm_probe * hdim * 4              # f32 h (+ cast headroom)
                    + tm_probe * dim * 4)                  # f32 result pre-cast
    use_resident = (not force_chunked) and (resident_est <= _VMEM_CAP)

    tm_target = tm if tm is not None else (256 if use_resident else 512)
    tm_eff, M_pad = _choose_tm(M, tm_target)
    if M_pad != M:
        x2d = jnp.pad(x2d, ((0, M_pad - M), (0, 0)))
    n_m = M_pad // tm_eff

    wfc = w_fc_t.astype(compute_dtype)
    wproj = w_proj_t.astype(compute_dtype)

    if use_resident:
        vmem_est = (2 * w_pair_bytes
                    + 2 * tm_eff * dim * (w_bytes + io_bytes)
                    + 2 * tm_eff * hdim * 4
                    + tm_eff * dim * 4)
        vmem_limit = int(min(max(int(1.25 * vmem_est), 32 << 20), _VMEM_CAP))
        cost = pl.CostEstimate(
            flops=4 * M_pad * dim * hdim,
            transcendentals=M_pad * hdim,
            # Weights hit HBM exactly once in this variant.
            bytes_accessed=int(M_pad * dim * (w_bytes + io_bytes) + w_pair_bytes),
        )
        # TODO(synk): pipeline_mode=pl.Buffered(1) on the weight specs would
        # reclaim the second (never-used) weight buffer; left off for maximum
        # portability since the constant index_map already avoids re-DMA.
        out2d = pl.pallas_call(
            _mlp_resident_kernel,
            out_shape=jax.ShapeDtypeStruct((M_pad, dim), x.dtype),
            grid_spec=pltpu.PrefetchScalarGridSpec(
                num_scalar_prefetch=0,
                grid=(n_m,),
                in_specs=[
                    pl.BlockSpec((tm_eff, dim), lambda i: (i, 0)),
                    # Constant block index -> fetched once, resident in VMEM.
                    pl.BlockSpec((dim, hdim), lambda i: (0, 0)),
                    pl.BlockSpec((hdim, dim), lambda i: (0, 0)),
                ],
                out_specs=pl.BlockSpec((tm_eff, dim), lambda i: (i, 0)),
            ),
            compiler_params=pltpu.CompilerParams(
                dimension_semantics=("parallel",),
                vmem_limit_bytes=vmem_limit,
            ),
            cost_estimate=cost,
        )(x2d, wfc, wproj)
    else:
        tk, hdim_pad = _pick_hdim_chunk(hdim, hdim_chunk)
        if hdim_pad != hdim:
            # Exact (see _pick_hdim_chunk).  Pad once at param-creation time if
            # this fallback path is ever hot.
            wfc = jnp.pad(wfc, ((0, 0), (0, hdim_pad - hdim)))
            wproj = jnp.pad(wproj, ((0, hdim_pad - hdim), (0, 0)))
        n_k = hdim_pad // tk

        vmem_est = (2 * tm_eff * dim * w_bytes             # x tiles
                    + 2 * tm_eff * dim * io_bytes          # out tiles
                    + 2 * (dim * tk + tk * dim) * w_bytes  # weight chunks (2-buffered)
                    + tm_eff * dim * 4                     # f32 accumulator scratch
                    + 2 * tm_eff * tk * 4)                 # f32 h intermediate
        vmem_limit = int(min(max(int(1.25 * vmem_est), 32 << 20), _VMEM_CAP))
        cost = pl.CostEstimate(
            flops=4 * M_pad * dim * hdim_pad,
            transcendentals=M_pad * hdim_pad,
            # Weights are re-streamed once per M tile in this fallback path.
            bytes_accessed=int(M_pad * dim * (w_bytes + io_bytes)
                               + n_m * 2 * dim * hdim_pad * w_bytes),
        )
        out2d = pl.pallas_call(
            _mlp_chunked_kernel,
            out_shape=jax.ShapeDtypeStruct((M_pad, dim), x.dtype),
            grid_spec=pltpu.PrefetchScalarGridSpec(
                num_scalar_prefetch=0,
                grid=(n_m, n_k),
                in_specs=[
                    pl.BlockSpec((tm_eff, dim), lambda i, k: (i, 0)),
                    pl.BlockSpec((dim, tk), lambda i, k: (0, k)),
                    pl.BlockSpec((tk, dim), lambda i, k: (k, 0)),
                ],
                out_specs=pl.BlockSpec((tm_eff, dim), lambda i, k: (i, 0)),
                scratch_shapes=[pltpu.VMEM((tm_eff, dim), jnp.float32)],
            ),
            compiler_params=pltpu.CompilerParams(
                dimension_semantics=("parallel", "arbitrary"),
                vmem_limit_bytes=vmem_limit,
            ),
            cost_estimate=cost,
        )(x2d, wfc, wproj)

    out = out2d[:M].reshape(orig_shape)
    # TODO(synk): PyTorch attaches `x.l_aux = 0.0` as a tensor attribute; no
    # JAX equivalent, so return it alongside the output.
    l_aux = jnp.zeros((), dtype=jnp.float32)
    return out, l_aux


def casted_linear_init(key, out_features, in_features, dtype=jnp.float32):
    # CastedLinear.reset_parameters: uniform(-bound, bound),
    # bound = sqrt(3) * 0.5 * in_features ** -0.5
    std = 0.5 * in_features ** (-0.5)
    bound = (3.0 ** 0.5) * std
    return jax.random.uniform(key, (out_features, in_features),
                              minval=-bound, maxval=bound, dtype=dtype)


def _ref_mlp(x, w_fc, w_proj):
    h = x @ w_fc.T
    h = h * jax.nn.sigmoid(h)
    return h @ w_proj.T


if __name__ == "__main__":
    key = jax.random.PRNGKey(0)

    # ---- test 1: resident-weight fast path (small GPT-ish shapes) ----------
    B, T, dim = 2, 8, 32
    hdim = 4 * dim
    k_x, k_fc, k_proj, k_x2, k_fc2, k_proj2 = jax.random.split(key, 6)

    x = jax.random.normal(k_x, (B, T, dim), dtype=jnp.float32)
    w_fc = casted_linear_init(k_fc, hdim, dim)      # PyTorch layout (hdim, dim)
    w_proj = casted_linear_init(k_proj, dim, hdim)  # PyTorch layout (dim, hdim)
    w_fc_t = jnp.asarray(w_fc.T)                    # canonical (dim, hdim)
    w_proj_t = jnp.asarray(w_proj.T)                # canonical (hdim, dim)

    ref = _ref_mlp(x, w_fc, w_proj)

    out, l_aux = mlp_forward(x, w_fc_t, w_proj_t)
    out = jax.block_until_ready(out)
    assert out.shape == (B, T, dim)
    assert jnp.allclose(out, ref, atol=1e-4, rtol=1e-4)

    # bf16 operands / f32 accumulation (training dtype).
    out_bf16, _ = mlp_forward(x.astype(jnp.bfloat16),
                              w_fc_t.astype(jnp.bfloat16),
                              w_proj_t.astype(jnp.bfloat16))
    out_bf16 = jax.block_until_ready(out_bf16)
    assert out_bf16.dtype == jnp.bfloat16
    assert jnp.allclose(out_bf16.astype(jnp.float32), ref, atol=5e-2, rtol=5e-2)

    # ---- test 2: exercise the chunked fallback path (forced) ---------------
    dim2 = 64
    hdim2 = 4 * dim2
    x2 = jax.random.normal(k_x2, (B, T, dim2), dtype=jnp.float32)
    w_fc2 = casted_linear_init(k_fc2, hdim2, dim2)
    w_proj2 = casted_linear_init(k_proj2, dim2, hdim2)
    ref2 = _ref_mlp(x2, w_fc2, w_proj2)

    out2, _ = mlp_forward(x2, jnp.asarray(w_fc2.T), jnp.asarray(w_proj2.T),
                          hdim_chunk=128, force_chunked=True)
    out2 = jax.block_until_ready(out2)
    assert jnp.allclose(out2, ref2, atol=1e-4, rtol=1e-4)

    print("KERNEL_OK")
</pallas_src>

<mosaic_0001>
module attributes {stable_mosaic.version = 11 : i64} {
  func.func @_mlp_resident_kernel(%arg0: i32, %arg1: memref<8x32xf32, #tpu.memory_space<vmem>>, %arg2: memref<32x128xf32, #tpu.memory_space<vmem>>, %arg3: memref<128x32xf32, #tpu.memory_space<vmem>>, %arg4: memref<8x32xf32, #tpu.memory_space<vmem>>) attributes {dimension_semantics = [#tpu.dimension_semantics<parallel>], iteration_bounds = array<i64: 2>, scalar_prefetch = 0 : i64, scratch_operands = 0 : i64, tpu.core_type = #tpu.core_type<tc>, window_params = [{transform_indices = @transform_0, window_bounds = array<i64: 8, 32>}, {pipeline_mode = #tpu.pipeline_mode<synchronous>, transform_indices = @transform_1, window_bounds = array<i64: 32, 128>}, {pipeline_mode = #tpu.pipeline_mode<synchronous>, transform_indices = @transform_2, window_bounds = array<i64: 128, 32>}, {transform_indices = @transform_3, window_bounds = array<i64: 8, 32>}]} {
    %c0 = arith.constant 0 : index
    %c0_0 = arith.constant 0 : index
    %0 = vector.load %arg1[%c0, %c0_0] : memref<8x32xf32, #tpu.memory_space<vmem>>, vector<8x32xf32>
    %c0_1 = arith.constant 0 : index
    %c0_2 = arith.constant 0 : index
    %1 = vector.load %arg2[%c0_1, %c0_2] : memref<32x128xf32, #tpu.memory_space<vmem>>, vector<32x128xf32>
    %cst = arith.constant dense<0.000000e+00> : vector<8x128xf32>
    %2 = tpu.matmul %0, %1, %cst {dimension_numbers = #tpu.dot_dimension_numbers<[1], [0], [0], [1], [0, 0, 1, 1], [], []>} : vector<8x32xf32>, vector<32x128xf32>, vector<8x128xf32> -> vector<8x128xf32>
    %3 = arith.negf %2 : vector<8x128xf32>
    %4 = math.exp %3 : vector<8x128xf32>
    %cst_3 = arith.constant 1.000000e+00 : f32
    %5 = vector.broadcast %cst_3 : f32 to vector<8x128xf32>
    %6 = arith.addf %5, %4 : vector<8x128xf32>
    %7 = arith.divf %5, %6 : vector<8x128xf32>
    %8 = arith.mulf %2, %7 : vector<8x128xf32>
    %c0_4 = arith.constant 0 : index
    %c0_5 = arith.constant 0 : index
    %9 = vector.load %arg3[%c0_4, %c0_5] : memref<128x32xf32, #tpu.memory_space<vmem>>, vector<128x32xf32>
    %cst_6 = arith.constant dense<0.000000e+00> : vector<8x32xf32>
    %10 = tpu.matmul %8, %9, %cst_6 {dimension_numbers = #tpu.dot_dimension_numbers<[1], [0], [0], [1], [0, 0, 1, 1], [], []>} : vector<8x128xf32>, vector<128x32xf32>, vector<8x32xf32> -> vector<8x32xf32>
    %c0_7 = arith.constant 0 : index
    %c0_8 = arith.constant 0 : index
    %11 = vector.load %arg4[%c0_7, %c0_8] : memref<8x32xf32, #tpu.memory_space<vmem>>, vector<8x32xf32>
    tpu.vector_store %arg4[%c0_7, %c0_8], %10 {strides = array<i32>} : memref<8x32xf32, #tpu.memory_space<vmem>>, vector<8x32xf32>,
    return
  }
  func.func @transform_0(%arg0: i32) -> (i32, i32) {
    %c0_i32 = arith.constant 0 : i32
    %c0_i32_0 = arith.constant 0 : i32
    return %arg0, %c0_i32 : i32, i32
  }
  func.func @transform_1(%arg0: i32) -> (i32, i32) {
    %c0_i32 = arith.constant 0 : i32
    %c0_i32_0 = arith.constant 0 : i32
    %c0_i32_1 = arith.constant 0 : i32
    return %c0_i32, %c0_i32_0 : i32, i32
  }
  func.func @transform_2(%arg0: i32) -> (i32, i32) {
    %c0_i32 = arith.constant 0 : i32
    %c0_i32_0 = arith.constant 0 : i32
    %c0_i32_1 = arith.constant 0 : i32
    return %c0_i32, %c0_i32_0 : i32, i32
  }
  func.func @transform_3(%arg0: i32) -> (i32, i32) {
    %c0_i32 = arith.constant 0 : i32
    %c0_i32_0 = arith.constant 0 : i32
    return %arg0, %c0_i32 : i32, i32
  }
}

</mosaic_0001>

<llo_original>
// kernel: mlp_forward.1
$region0: #{mlp_forward.1}
  #allocation0 [shape = 'u32[]', space=smem, size = 0x4, offset = 0x4, fixed_abs, tag = 'smem constant byte address 0x4 - core index']
  #allocation1 [shape = 'u32[144,128]{1,0:T(1,128)}', space=vmem, size = 0x12000, scoped, tag = 'internal scratch']
  %s0 = inlined_call_operand.vmem [shape: f32[16,32], index: 0, kind: input, shape index: {}]
  %s1 = inlined_call_operand.vmem [shape: f32[32,128], index: 1, kind: input, shape index: {}]
  %s2 = inlined_call_operand.vmem [shape: f32[128,32], index: 2, kind: input, shape index: {}]
  %s3 = inlined_call_operand.hbm [shape: f32[16,32], index: 3, kind: output, shape index: {}]
  %s4 = sld [smem:[#allocation0]]
  $region45: #{mlp_forward.1} parent=0
    _
  %s6 = ssub.s32 1, %s4
  %s7 = scalar_select 0, %s6, %s4
  $region1: #{mlp_forward.1} parent=0
    #allocation2 [shape = 'u8[8192]{0}', space=vmem, size = 0x2000, scoped, tag = 'output window, operand 0']
    #allocation3 [shape = 's32[2]{0}', space=sflag, size = 0x8, scoped, tag = 'scoped memory for mlp_forward.1']
    %8 = vsyncpa [#allocation3], 0
    %s9 = scalar_lea.sflag [#allocation3], 1
    %10 = vsyncpa %s9, 0
    loop: start=0, step=1, limit=4
    $region2: #{mlp_forward.1} parent=1 // loop_pre_header
      _
    $region3: #{mlp_forward.1} parent=1 // loop_header
      %s12 = sphi 0, %s16
      %p13 = scmp.ge.s32.totalorder %s12, 4
      %s22 = sphi 0, %s24
      %s25 = sphi 0, %s22
      %s26 = sphi 0, %s25
      %s42 = sphi 0, %s26
      %s46 = sphi 0, %s46
      %s48 = sphi 0, %s46
      %s49 = sphi 0, %s48
      %s63 = sphi 0, %s49
      %s67 = sphi 0, %s67
      %s69 = sphi 0, %s67
      %s70 = sphi 0, %s69
      %s84 = sphi 0, %s70
      %s90 = sphi 0, %s92
      %s93 = sphi 0, %s90
      %s94 = sphi 0, %s93
      %s110 = sphi 0, %s94
    $region4: #{mlp_forward.1} parent=1 // loop_header_branch
      %15 = sbr.rel (%p13) target = $region8
    $region5: #{mlp_forward.1} parent=1 // loop_body
      %s17 = ssub.s32 %s12, 1
      %s18 = ssub.s32 %s12, 2
      %s19 = sadd.s32 %s12, 1
      %s20 = ssub.s32 %s12, %s19
      %p21 = scmp.eq.s32.totalorder %s20, 0
      %s23 = sadd.s32 %s22, 1
      %s24 = scalar_select %p21, %s22, %s23
      %p27 = pneg %p21
      %p28 = scmp.eq.s32.totalorder %s12, 1
      %p29 = por %p27, %p28
      %p30 = scmp.ne.s32.totalorder %s22, %s25
      %p31 = scmp.eq.s32.totalorder %s12, 0
      %p32 = por %p30, %p31
      %p33 = scmp.ne.s32.totalorder %s22, %s25
      %p34 = scmp.eq.s32.totalorder %s17, 1
      %p35 = por %p33, %p34
      %p36 = scmp.ne.s32.totalorder %s25, %s26
      %p37 = scmp.eq.s32.totalorder %s17, 0
      %p38 = por %p36, %p37
      %p39 = scmp.ne.s32.totalorder %s25, %s26
      %p40 = scmp.eq.s32.totalorder %s18, 1
      %p41 = por %p39, %p40
      %p43 = scmp.ne.s32.totalorder %s26, %s42
      %p44 = scmp.eq.s32.totalorder %s18, 0
      %p45 = por %p43, %p44
      %s47 = sadd.s32 %s46, 1
      %p50 = scmp.eq.s32.totalorder %s12, 1
      %p51 = scmp.ne.s32.totalorder %s46, %s48
      %p52 = scmp.eq.s32.totalorder %s12, 0
      %p53 = por %p51, %p52
      %p54 = scmp.ne.s32.totalorder %s46, %s48
      %p55 = scmp.eq.s32.totalorder %s17, 1
      %p56 = por %p54, %p55
      %p57 = scmp.ne.s32.totalorder %s48, %s49
      %p58 = scmp.eq.s32.totalorder %s17, 0
      %p59 = por %p57, %p58
      %p60 = scmp.ne.s32.totalorder %s48, %s49
      %p61 = scmp.eq.s32.totalorder %s18, 1
      %p62 = por %p60, %p61
      %p64 = scmp.ne.s32.totalorder %s49, %s63
      %p65 = scmp.eq.s32.totalorder %s18, 0
      %p66 = por %p64, %p65
      %s68 = sadd.s32 %s67, 1
      %p71 = scmp.eq.s32.totalorder %s12, 1
      %p72 = scmp.ne.s32.totalorder %s67, %s69
      %p73 = scmp.eq.s32.totalorder %s12, 0
      %p74 = por %p72, %p73
      %p75 = scmp.ne.s32.totalorder %s67, %s69
      %p76 = scmp.eq.s32.totalorder %s17, 1
      %p77 = por %p75, %p76
      %p78 = scmp.ne.s32.totalorder %s69, %s70
      %p79 = scmp.eq.s32.totalorder %s17, 0
      %p80 = por %p78, %p79
      %p81 = scmp.ne.s32.totalorder %s69, %s70
      %p82 = scmp.eq.s32.totalorder %s18, 1
      %p83 = por %p81, %p82
      %p85 = scmp.ne.s32.totalorder %s70, %s84
      %p86 = scmp.eq.s32.totalorder %s18, 0
      %p87 = por %p85, %p86
      %s88 = ssub.s32 %s12, %s19
      %p89 = scmp.eq.s32.totalorder %s88, 0
      %s91 = sadd.s32 %s90, 1
      %s92 = scalar_select %p89, %s90, %s91
      %p95 = pneg %p89
      %p96 = scmp.eq.s32.totalorder %s12, 1
      %p97 = por %p95, %p96
      %p98 = scmp.ne.s32.totalorder %s90, %s93
      %p99 = scmp.eq.s32.totalorder %s12, 0
      %p100 = por %p98, %p99
      %p101 = scmp.ne.s32.totalorder %s90, %s93
      %p102 = scmp.eq.s32.totalorder %s17, 1
      %p103 = por %p101, %p102
      %p104 = scmp.ne.s32.totalorder %s93, %s94
      %p105 = scmp.eq.s32.totalorder %s17, 0
      %p106 = por %p104, %p105
      %p107 = scmp.ne.s32.totalorder %s93, %s94
      %p108 = scmp.eq.s32.totalorder %s18, 1
      %p109 = por %p107, %p108
      %p111 = scmp.ne.s32.totalorder %s94, %s110
      %p112 = scmp.eq.s32.totalorder %s18, 0
      %p113 = por %p111, %p112
      %p114 = scmp.le.s32.totalorder 1, %s12
      %p115 = scmp.lt.s32.totalorder %s12, 3
      %p116 = pnand %p114, %p115
      %p117 = pneg %p116
      // Predicated region
      $region9: #{mlp_forward.1} parent=5 // pred_check
        _
      $region10: #{mlp_forward.1} parent=5 // pred_check_branch
        %119 = sbr.rel (%p116) target = $region12
      $region11: #{mlp_forward.1} parent=5 // pred_region
        %s120 = ssub.s32 %s12, 1
        // Predicated region
        $region13: #{mlp_forward.1} parent=11 // pred_check
          %p121 = pneg %p59
        $region14: #{mlp_forward.1} parent=11 // pred_check_branch
          %123 = sbr.rel (%p121) target = $region16
        $region15: #{mlp_forward.1} parent=11 // pred_region
          _
        $region16: #{mlp_forward.1} parent=11 // pred_fallthru
          _
        // Predicated region
        $region17: #{mlp_forward.1} parent=11 // pred_check
          %p124 = pneg %p80
        $region18: #{mlp_forward.1} parent=11 // pred_check_branch
          %126 = sbr.rel (%p124) target = $region20
        $region19: #{mlp_forward.1} parent=11 // pred_region
          _
        $region20: #{mlp_forward.1} parent=11 // pred_fallthru
          _
      $region12: #{mlp_forward.1} parent=5 // pred_fallthru
        _
      %p127 = scmp.lt.s32.totalorder %s12, 2
      // Predicated region
      $region21: #{mlp_forward.1} parent=5 // pred_check
        %p128 = pneg %p127
      $region22: #{mlp_forward.1} parent=5 // pred_check_branch
        %130 = sbr.rel (%p128) target = $region24
      $region23: #{mlp_forward.1} parent=5 // pred_region
        // Predicated region
        $region25: #{mlp_forward.1} parent=23 // pred_check
          %p131 = pneg %p32
        $region26: #{mlp_forward.1} parent=23 // pred_check_branch
          %133 = sbr.rel (%p131) target = $region28
        $region27: #{mlp_forward.1} parent=23 // pred_region
          %p134 = scmp.lt.s32.totalorder %s12, 1
          %s135 = scalar_select %p134, %s12, 1
          %s136 = smul.addr %s135, 8
          %s137 = scalar_lea.vmem %s0, %s136
        $region28: #{mlp_forward.1} parent=23 // pred_fallthru
          _
      $region24: #{mlp_forward.1} parent=5 // pred_fallthru
        _
      %p138 = scmp.le.s32.totalorder 1, %s12
      %p139 = scmp.lt.s32.totalorder %s12, 3
      %p140 = pnand %p138, %p139
      %p141 = pneg %p140
      // Predicated region
      $region29: #{mlp_forward.1} parent=5 // pred_check
        _
      $region30: #{mlp_forward.1} parent=5 // pred_check_branch
        %143 = sbr.rel (%p140) target = $region32
      $region31: #{mlp_forward.1} parent=5 // pred_region
        %s144 = ssub.s32 %s12, 1
        %p145 = scmp.lt.s32.totalorder %s17, 1
        %s146 = scalar_select %p145, %s17, 1
        %s147 = smul.addr %s146, 8
        %s148 = scalar_lea.vmem %s0, %s147
        %p149 = pneg %p38
        %p150 = pneg %p35
        %p151 = pneg %p59
        %p152 = pneg %p56
        %p153 = pneg %p80
        %p154 = pneg %p77
        %p155 = pneg %p106
        %p156 = pneg %p103
        %s157 = sand.u32 %s93, 1
        %s158 = scalar_lea.sflag [#allocation3], %s157
        %s159 = sand.u32 %s93, 1
        %s160 = smul.addr %s159, 8
        %s161 = scalar_lea.vmem [#allocation2], %s160
        %p162 = scmp.lt.s32.totalorder %s17, 1
        %s163 = scalar_select %p162, %s17, 1
        %s164 = smul.addr %s163, 8
        %s165 = scalar_lea.vmem %s0, %s164
        %v166 = vld [vmem:[%s165] sm:$0xff]
        %v167 = vld [vmem:[%s1] sm:$0xff]
        %v168 = vld [vmem:[%s1 + $0x8] sm:$0xff]
        %v169 = vld [vmem:[%s1 + $0x10] sm:$0xff]
        %v170 = vld [vmem:[%s1 + $0x18] sm:$0xff]
        %vm171 = vcmask 261120
        %v173 = vsel %vm171, %v166, 0
        %175 = vmatprep.subr.mxu0 0.0
        %176 = vmatpush1.msra.mxu0 0.0
        %177 = vmatprep.subr.mxu0 0.0
        %178 = vmatpush1.msra.mxu0 0.0
        %179 = vmatprep.subr.mxu0 0.0
        %180 = vmatpush1.msra.mxu0 0.0
        %181 = vmatprep.subr.mxu0 0.0
        %182 = vmatpush1.msra.mxu0 0.0
        %183 = vmatprep.subr.mxu0 0.0
        %184 = vmatpush1.msra.mxu0 0.0
        %185 = vmatprep.subr.mxu0 0.0
        %186 = vmatpush1.msra.mxu0 0.0
        %187 = vmatprep.subr.mxu0 0.0
        %188 = vmatpush1.msra.mxu0 0.0
        %189 = vmatprep.subr.mxu0 0.0
        %190 = vmatpush1.msra.mxu0 0.0
        %191 = vmatprep.subr.mxu0 0.0
        %192 = vmatpush1.msra.mxu0 0.0
        %193 = vmatprep.subr.mxu0 0.0
        %194 = vmatpush1.msra.mxu0 0.0
        %195 = vmatprep.subr.mxu0 0.0
        %196 = vmatpush1.msra.mxu0 0.0
        %197 = vmatprep.subr.mxu0 0.0
        %198 = vmatpush1.msra.mxu0 0.0
        %199 = vmatprep.subr.mxu0 0.0
        %200 = vmatpush1.msra.mxu0 %v170
        %201 = vmatprep.subr.mxu0 0.0
        %202 = vmatpush1.msra.mxu0 %v169
        %203 = vmatprep.subr.mxu0 0.0
        %204 = vmatpush1.msra.mxu0 %v168
        %205 = vmatprep.subr.mxu0 0.0
        %206 = vmatpush1.msra.mxu0 %v167
        %207 = vmatprep.subr.mxu0 0.0
        %208 = vmatpush2.msra.mxu0 0.0
        %209 = vmatprep.subr.mxu0 0.0
        %210 = vmatpush2.msra.mxu0 0.0
        %211 = vmatprep.subr.mxu0 0.0
        %212 = vmatpush2.msra.mxu0 0.0
        %213 = vmatprep.subr.mxu0 0.0
        %214 = vmatpush2.msra.mxu0 0.0
        %215 = vmatprep.subr.mxu0 0.0
        %216 = vmatpush2.msra.mxu0 0.0
        %217 = vmatprep.subr.mxu0 0.0
        %218 = vmatpush2.msra.mxu0 0.0
        %219 = vmatprep.subr.mxu0 0.0
        %220 = vmatpush2.msra.mxu0 0.0
        %221 = vmatprep.subr.mxu0 0.0
        %222 = vmatpush2.msra.mxu0 0.0
        %223 = vmatprep.subr.mxu0 0.0
        %224 = vmatpush2.msra.mxu0 0.0
        %225 = vmatprep.subr.mxu0 0.0
        %226 = vmatpush2.msra.mxu0 0.0
        %227 = vmatprep.subr.mxu0 0.0
        %228 = vmatpush2.msra.mxu0 0.0
        %229 = vmatprep.subr.mxu0 0.0
        %230 = vmatpush2.msra.mxu0 0.0
        %231 = vmatprep.subr.mxu0 0.0
        %232 = vmatpush2.msra.mxu0 0.0
        %233 = vmatprep.subr.mxu0 0.0
        %234 = vmatpush2.msra.mxu0 0.0
        %235 = vmatprep.subr.mxu0 0.0
        %236 = vmatpush2.msra.mxu0 0.0
        %237 = vmatprep.subr.mxu0 0.0
        %238 = vmatpush2.msra.mxu0 0.0
        %239 = vmatprep.mubr.f32.mxu0 0.0
        %240 = vmatmul.mubr.f32.gmra.mxu0 %v173
        %v241 = vpop.f32.mrf.mxu0
        %v242 = vadd.f32 0.0, %v241
        %v243 = vpop.f32.mrf.mxu0
        %244 = vdwg.mxu0
        %v245 = vxor.u32 %v242, 2147483648
        %v246 = vmul.f32 %v245, 1.442695
        %v247 = vpow.pop %v246
        %v248 = vadd.f32 %v247, 1.0
        %v249 = vrcp.pop %v248
        %v250 = vmul.f32 1.0, %v249
        %v251 = vmul.f32 %v242, %v250
        %v252 = vld [vmem:[%s2] sm:$0xff]
        %v253 = vld [vmem:[%s2 + $0x8] sm:$0xff]
        %v254 = vld [vmem:[%s2 + $0x10] sm:$0xff]
        %v255 = vld [vmem:[%s2 + $0x18] sm:$0xff]
        %v256 = vld [vmem:[%s2 + $0x20] sm:$0xff]
        %v257 = vld [vmem:[%s2 + $0x28] sm:$0xff]
        %v258 = vld [vmem:[%s2 + $0x30] sm:$0xff]
        %v259 = vld [vmem:[%s2 + $0x38] sm:$0xff]
        %v260 = vld [vmem:[%s2 + $0x40] sm:$0xff]
        %v261 = vld [vmem:[%s2 + $0x48] sm:$0xff]
        %v262 = vld [vmem:[%s2 + $0x50] sm:$0xff]
        %v263 = vld [vmem:[%s2 + $0x58] sm:$0xff]
        %v264 = vld [vmem:[%s2 + $0x60] sm:$0xff]
        %v265 = vld [vmem:[%s2 + $0x68] sm:$0xff]
        %v266 = vld [vmem:[%s2 + $0x70] sm:$0xff]
        %v267 = vld [vmem:[%s2 + $0x78] sm:$0xff]
        %268 = vmatprep.subr.mxu0 0.0
        %269 = vmatpush1.msra.mxu0 %v267
        %270 = vmatprep.subr.mxu0 0.0
        %271 = vmatpush1.msra.mxu0 %v266
        %272 = vmatprep.subr.mxu0 0.0
        %273 = vmatpush1.msra.mxu0 %v265
        %274 = vmatprep.subr.mxu0 0.0
        %275 = vmatpush1.msra.mxu0 %v264
        %276 = vmatprep.subr.mxu0 0.0
        %277 = vmatpush1.msra.mxu0 %v263
        %278 = vmatprep.subr.mxu0 0.0
        %279 = vmatpush1.msra.mxu0 %v262
        %280 = vmatprep.subr.mxu0 0.0
        %281 = vmatpush1.msra.mxu0 %v261
        %282 = vmatprep.subr.mxu0 0.0
        %283 = vmatpush1.msra.mxu0 %v260
        %284 = vmatprep.subr.mxu0 0.0
        %285 = vmatpush1.msra.mxu0 %v259
        %286 = vmatprep.subr.mxu0 0.0
        %287 = vmatpush1.msra.mxu0 %v258
        %288 = vmatprep.subr.mxu0 0.0
        %289 = vmatpush1.msra.mxu0 %v257
        %290 = vmatprep.subr.mxu0 0.0
        %291 = vmatpush1.msra.mxu0 %v256
        %292 = vmatprep.subr.mxu0 0.0
        %293 = vmatpush1.msra.mxu0 %v255
        %294 = vmatprep.subr.mxu0 0.0
        %295 = vmatpush1.msra.mxu0 %v254
        %296 = vmatprep.subr.mxu0 0.0
        %297 = vmatpush1.msra.mxu0 %v253
        %298 = vmatprep.subr.mxu0 0.0
        %299 = vmatpush1.msra.mxu0 %v252
        %300 = vmatprep.subr.mxu0 0.0
        %301 = vmatpush2.msra.mxu0 0.0
        %302 = vmatprep.subr.mxu0 0.0
        %303 = vmatpush2.msra.mxu0 0.0
        %304 = vmatprep.subr.mxu0 0.0
        %305 = vmatpush2.msra.mxu0 0.0
        %306 = vmatprep.subr.mxu0 0.0
        %307 = vmatpush2.msra.mxu0 0.0
        %308 = vmatprep.subr.mxu0 0.0
        %309 = vmatpush2.msra.mxu0 0.0
        %310 = vmatprep.subr.mxu0 0.0
        %311 = vmatpush2.msra.mxu0 0.0
        %312 = vmatprep.subr.mxu0 0.0
        %313 = vmatpush2.msra.mxu0 0.0
        %314 = vmatprep.subr.mxu0 0.0
        %315 = vmatpush2.msra.mxu0 0.0
        %316 = vmatprep.subr.mxu0 0.0
        %317 = vmatpush2.msra.mxu0 0.0
        %318 = vmatprep.subr.mxu0 0.0
        %319 = vmatpush2.msra.mxu0 0.0
        %320 = vmatprep.subr.mxu0 0.0
        %321 = vmatpush2.msra.mxu0 0.0
        %322 = vmatprep.subr.mxu0 0.0
        %323 = vmatpush2.msra.mxu0 0.0
        %324 = vmatprep.subr.mxu0 0.0
        %325 = vmatpush2.msra.mxu0 0.0
        %326 = vmatprep.subr.mxu0 0.0
        %327 = vmatpush2.msra.mxu0 0.0
        %328 = vmatprep.subr.mxu0 0.0
        %329 = vmatpush2.msra.mxu0 0.0
        %330 = vmatprep.subr.mxu0 0.0
        %331 = vmatpush2.msra.mxu0 0.0
        %332 = vmatprep.mubr.f32.mxu0 0.0
        %333 = vmatmul.mubr.f32.gmra.mxu0 %v251
        %v334 = vpop.f32.mrf.mxu0
        %v335 = vadd.f32 0.0, %v334
        %v336 = vpop.f32.mrf.mxu0
        %337 = vdwg.mxu0
        %338 = vst.msk [vmem:[%s161] sm:$0xff] %vm171, %v335
        %s339 = sand.u32 %s93, 1
        %s340 = scalar_lea.sflag [#allocation3], %s339
        %s341 = sand.u32 %s93, 1
        %s342 = smul.addr %s341, 8
        %s343 = scalar_lea.vmem [#allocation2], %s342
        // Predicated region
        $region33: #{mlp_forward.1} parent=31 // pred_check
          %p344 = pneg %p103
        $region34: #{mlp_forward.1} parent=31 // pred_check_branch
          %346 = sbr.rel (%p344) target = $region36
        $region35: #{mlp_forward.1} parent=31 // pred_region
          %s348 = ssub.s32 128, 128
          %349 = vsyncadd %s340, %s348
          %s350 = smul.addr %s17, 128
          %s351 = scalar_lea.hbm %s3, %s350
          %s353 = sshll.u32 %s343, 4
          %s354 = int_to_ptr.vmem [resolvable:$true] %s353
          %356 = dma.vmem_to_hbm [thread:$0]  %s354, 128, %s351, %s340
        $region36: #{mlp_forward.1} parent=31 // pred_fallthru
          _
      $region32: #{mlp_forward.1} parent=5 // pred_fallthru
        _
      %p357 = scmp.le.s32.totalorder 2, %s12
      // Predicated region
      $region37: #{mlp_forward.1} parent=5 // pred_check
        %p358 = pneg %p357
      $region38: #{mlp_forward.1} parent=5 // pred_check_branch
        %360 = sbr.rel (%p358) target = $region40
      $region39: #{mlp_forward.1} parent=5 // pred_region
        %s361 = ssub.s32 %s12, 2
        // Predicated region
        $region41: #{mlp_forward.1} parent=39 // pred_check
          %p362 = pneg %p109
        $region42: #{mlp_forward.1} parent=39 // pred_check_branch
          %364 = sbr.rel (%p362) target = $region44
        $region43: #{mlp_forward.1} parent=39 // pred_region
          %s365 = sand.u32 %s94, 1
          %s366 = scalar_lea.sflag [#allocation3], %s365
          %s367 = sand.u32 %s94, 1
          %s368 = smul.addr %s367, 8
          %s369 = scalar_lea.vmem [#allocation2], %s368
          %370 = dma.done %s366, 128
        $region44: #{mlp_forward.1} parent=39 // pred_fallthru
          _
      $region40: #{mlp_forward.1} parent=5 // pred_fallthru
        _
    $region6: #{mlp_forward.1} parent=1 // loop_footer
      %s16 = sadd.s32 1, %s12
    $region7: #{mlp_forward.1} parent=1 // loop_footer_branch
      %11 = sbr.rel target = $region3
    $region8: #{mlp_forward.1} parent=1 // loop_exit
      _
    %371 = vsyncpa [#allocation3], 1
    %s372 = scalar_lea.sflag [#allocation3], 1
    %373 = vsyncpa %s372, 1

</llo_original>
